<compile_context>
chip_gen: v6e
topology: v6e:2x2x1
jax: 0.10.0
libtpu: 0.0.40
codegen_flags: <defaults>
</compile_context>

<pallas_src>
import functools

import jax
import jax.numpy as jnp
from jax.experimental import pallas as pl
from jax.experimental.pallas import tpu as pltpu

TILE_ROWS = 256              # 256 x 1024 f32 block = 1 MiB per buffer
_MIN_PALLAS_BYTES = 1 << 20  # below ~1 MiB a standalone kernel only adds overhead


def _scale_kernel(scale_ref, x_ref, o_ref):
    # scale is a runtime scalar living in SMEM; cast once to the output dtype
    # so bf16 inputs multiply natively (no f32 round trip).
    o_ref[...] = x_ref[...] * scale_ref[0].astype(o_ref.dtype)


def _pick_lane_width(total):
    # Largest lane-dense width (multiple of 128) dividing the flat size, so no
    # padding / tail slice is ever needed (each costs a full HBM round trip).
    for lane in (1024, 512, 256, 128):
        if total % lane == 0:
            return lane
    return None


def _pick_block_rows(rows):
    if rows <= 8:
        return rows  # single full-extent block (allowed: equals the array dim)
    # Aim for >= ~4 grid tiles (pipeline depth + both v7x TensorCores busy),
    # keep the sublane dim a multiple of 8, and cap the VMEM footprint.
    target = max(8, (rows // 4) // 8 * 8)
    return min(TILE_ROWS, target)


@functools.partial(jax.jit, static_argnames=("force_pallas",))
def scale_forward(x, scale, *, force_pallas=False):
    """Elementwise x * scale (PyTorch `Scale.forward`)."""
    total = x.size
    lane = _pick_lane_width(total)
    use_pallas = (
        jnp.issubdtype(x.dtype, jnp.floating)
        and lane is not None
        and (force_pallas or total * x.dtype.itemsize >= _MIN_PALLAS_BYTES)
    )
    if not use_pallas:
        # Tiny tensors: dispatch overhead dominates, let XLA fuse it.
        # Ragged sizes: would need pad+slice (2 extra HBM passes) — not worth it.
        # Integer tensors: keep PyTorch-style promotion (int * float -> float).
        return x * scale

    scale_arr = jnp.asarray(scale, dtype=jnp.float32).reshape((1,))

    rows = total // lane
    block_rows = _pick_block_rows(rows)
    grid = (pl.cdiv(rows, block_rows),)  # ragged last block is clipped by Pallas

    x2d = x.reshape(rows, lane)          # free bitcast under jit

    out2d = pl.pallas_call(
        _scale_kernel,
        out_shape=jax.ShapeDtypeStruct((rows, lane), x.dtype),
        grid=grid,
        in_specs=[
            pl.BlockSpec(memory_space=pltpu.MemorySpace.SMEM),   # runtime scale scalar
            pl.BlockSpec((block_rows, lane), lambda i: (i, 0)),
        ],
        out_specs=pl.BlockSpec((block_rows, lane), lambda i: (i, 0)),
        compiler_params=pltpu.CompilerParams(
            dimension_semantics=("parallel",),
        ),
    )(scale_arr, x2d)

    return out2d.reshape(x.shape)


if __name__ == "__main__":
    key = jax.random.PRNGKey(0)
    scale = 0.5  # the module's __init__ argument

    # Small NCHW activation consistent with the module's usage.
    x = jax.random.normal(key, (2, 4, 16, 16), dtype=jnp.float32)

    # Force the Pallas path so the kernel itself is exercised even though the
    # tensor is below the small-tensor fast-path threshold.
    y = scale_forward(x, scale, force_pallas=True)
    jax.block_until_ready(y)
    y_ref = x * scale
    assert y.shape == x.shape and y.dtype == x.dtype
    assert jnp.allclose(y, y_ref, atol=1e-6, rtol=1e-6)

    # Default path for the tiny tensor (XLA fast path) — same numerics.
    y_fast = scale_forward(x, scale)
    jax.block_until_ready(y_fast)
    assert jnp.allclose(y_fast, y_ref, atol=1e-6, rtol=1e-6)

    # Modestly larger input to exercise the multi-tile / megacore grid path.
    x2 = jax.random.normal(jax.random.PRNGKey(1), (8, 32, 32, 32), dtype=jnp.float32)
    y2 = scale_forward(x2, 1.7, force_pallas=True)
    jax.block_until_ready(y2)
    assert jnp.allclose(y2, x2 * 1.7, atol=1e-5, rtol=1e-5)

    print("KERNEL_OK")
</pallas_src>

<mosaic_0001>
module attributes {stable_mosaic.version = 11 : i64} {
  func.func @_scale_kernel(%arg0: i32, %arg1: memref<1xf32, #tpu.memory_space<smem>>, %arg2: memref<2x1024xf32, #tpu.memory_space<vmem>>, %arg3: memref<2x1024xf32, #tpu.memory_space<vmem>>) attributes {dimension_semantics = [#tpu.dimension_semantics<parallel>], iteration_bounds = array<i64: 1>, scalar_prefetch = 0 : i64, scratch_operands = 0 : i64, tpu.core_type = #tpu.core_type<tc>, window_params = [{transform_indices = @transform_0, window_bounds = array<i64: 1>}, {transform_indices = @transform_1, window_bounds = array<i64: 2, 1024>}, {transform_indices = @transform_2, window_bounds = array<i64: 2, 1024>}]} {
    %c0 = arith.constant 0 : index
    %c0_0 = arith.constant 0 : index
    %0 = vector.load %arg2[%c0, %c0_0] : memref<2x1024xf32, #tpu.memory_space<vmem>>, vector<2x1024xf32>
    %c0_1 = arith.constant 0 : index
    %1 = memref.load %arg1[%c0_1] : memref<1xf32, #tpu.memory_space<smem>>
    %2 = vector.broadcast %1 : f32 to vector<2x1024xf32>
    %3 = arith.mulf %0, %2 : vector<2x1024xf32>
    %c0_2 = arith.constant 0 : index
    %c0_3 = arith.constant 0 : index
    %4 = vector.load %arg3[%c0_2, %c0_3] : memref<2x1024xf32, #tpu.memory_space<vmem>>, vector<2x1024xf32>
    tpu.vector_store %arg3[%c0_2, %c0_3], %3 {strides = array<i32>} : memref<2x1024xf32, #tpu.memory_space<vmem>>, vector<2x1024xf32>,
    return
  }
  func.func @transform_0(%arg0: i32) -> i32 {
    %c0_i32 = arith.constant 0 : i32
    %c0_i32_0 = arith.constant 0 : i32
    return %c0_i32 : i32
  }
  func.func @transform_1(%arg0: i32) -> (i32, i32) {
    %c0_i32 = arith.constant 0 : i32
    %c0_i32_0 = arith.constant 0 : i32
    return %arg0, %c0_i32 : i32, i32
  }
  func.func @transform_2(%arg0: i32) -> (i32, i32) {
    %c0_i32 = arith.constant 0 : i32
    %c0_i32_0 = arith.constant 0 : i32
    return %arg0, %c0_i32 : i32, i32
  }
}

</mosaic_0001>

<llo_original>
// kernel: scale_forward.1
$region0: #{scale_forward.1}
  #allocation0 [shape = 'u32[]', space=smem, size = 0x4, offset = 0x4, fixed_abs, tag = 'smem constant byte address 0x4 - core index']
  #allocation1 [shape = 'u32[144,128]{1,0:T(1,128)}', space=vmem, size = 0x12000, scoped, tag = 'internal scratch']
  #allocation2 [shape = 'f32[1]{0:T(128)S(6)}', space=smem, size = 0x200, scoped, tag = 'scoped memory for scale_forward.1']
  %s0 = inlined_call_operand.<no memory space> [shape: f32[1], index: 0, kind: input, shape index: {}]
  %s1 = inlined_call_operand.vmem [shape: f32[2,1024], index: 1, kind: input, shape index: {}]
  %s2 = inlined_call_operand.vmem [shape: f32[2,1024], index: 2, kind: output, shape index: {}]
  %s3 = sld [smem:[#allocation0]]
  $region18: #{scale_forward.1} parent=0
    _
  %s5 = ssub.s32 1, %s3
  %s6 = scalar_select 0, %s5, %s3
  %7 = sst [smem:[#allocation2]] %s0
  // Predicated region
  $region2: #{scale_forward.1} parent=0 // pred_check
    _
  $region3: #{scale_forward.1} parent=0 // pred_check_branch
    %9 = sbr.rel (0) target = $region5
  $region4: #{scale_forward.1} parent=0 // pred_region
    _
  $region5: #{scale_forward.1} parent=0 // pred_fallthru
    _
  // Predicated region
  $region6: #{scale_forward.1} parent=0 // pred_check
    _
  $region7: #{scale_forward.1} parent=0 // pred_check_branch
    %11 = sbr.rel (0) target = $region9
  $region8: #{scale_forward.1} parent=0 // pred_region
    _
  $region9: #{scale_forward.1} parent=0 // pred_fallthru
    _
  %v12 = vld [vmem:[%s1] sm:$0xff]
  %v13 = vld [vmem:[%s1 + $0x8] sm:$0xff]
  %s14 = sld [smem:[#allocation2]]
  %v15 = vstv %s14
  %v16 = vmul.f32 %v12, %v15
  %v17 = vmul.f32 %v13, %v15
  %18 = vst [vmem:[%s2] sm:$0xff] %v16
  %19 = vst [vmem:[%s2 + $0x8] sm:$0xff] %v17
  // Predicated region
  $region10: #{scale_forward.1} parent=0 // pred_check
    _
  $region11: #{scale_forward.1} parent=0 // pred_check_branch
    %21 = sbr.rel (0) target = $region13
  $region12: #{scale_forward.1} parent=0 // pred_region
    _
  $region13: #{scale_forward.1} parent=0 // pred_fallthru
    _
  // Predicated region
  $region14: #{scale_forward.1} parent=0 // pred_check
    _
  $region15: #{scale_forward.1} parent=0 // pred_check_branch
    %23 = sbr.rel (0) target = $region17
  $region16: #{scale_forward.1} parent=0 // pred_region
    _
  $region17: #{scale_forward.1} parent=0 // pred_fallthru
    _

</llo_original>
